<compile_context>
chip_gen: v6e
topology: v6e:2x2x1
jax: 0.10.0
libtpu: 0.0.40
codegen_flags: <defaults>
</compile_context>

<pallas_src>
import jax
import jax.numpy as jnp
from jax import lax
from jax.experimental import pallas as pl
from jax.experimental.pallas import tpu as pltpu

ALPHABET_SIZE = 126 - 31 + 1          # 96
SIZE = 8                              # stand-in for args.size (argparse in original)
IN_FEATURES = SIZE * ALPHABET_SIZE    # 768  (multiple of 128 -> lane dense)
HIDDEN = 100                          # logical hidden size (matches the PyTorch module)
HIDDEN_PAD = 128                      # padded hidden size (lane dense)
BATCH = 32                            # small demo batch
MAX_TILE_B = 1024                     # VMEM-safe cap on batch rows per grid step


def _ru(n, m):
    return -(-n // m) * m


# Row offsets inside the packed bf16 weight/bias blob.  All offsets are
# 16-aligned so static row slices are free ref views under bf16 (16,128) tiling.
R_W1 = 0                                   # rows 0:768     w1  (in, out)
R_W2 = _ru(R_W1 + IN_FEATURES, 16)         # rows 768:896   w2
R_W3 = _ru(R_W2 + HIDDEN_PAD, 16)          # rows 896:1024  w3
R_W4 = _ru(R_W3 + HIDDEN_PAD, 16)          # rows 1024:1040 w4 block (row 0 = w4)
R_B = R_W4 + 16                            # rows 1040:1056 biases (b1,b2,b3,[b4 @ lane0])
R_TOTAL = R_B + 16                         # 1056 rows total


def mlp_kernel(x_ref, w_ref, o_ref):
    # Free static views into the single resident weight/bias blob.
    w1 = w_ref[R_W1:R_W1 + IN_FEATURES, :]        # (768, 128) bf16
    w2 = w_ref[R_W2:R_W2 + HIDDEN_PAD, :]         # (128, 128)
    w3 = w_ref[R_W3:R_W3 + HIDDEN_PAD, :]         # (128, 128)
    w4 = w_ref[R_W4:R_W4 + 16, :]                 # (16, 128), row 0 = w4, rows 1..15 = 0
    b1 = w_ref[R_B + 0:R_B + 1, :]                # (1, 128)
    b2 = w_ref[R_B + 1:R_B + 2, :]
    b3 = w_ref[R_B + 2:R_B + 3, :]
    b4 = w_ref[R_B + 3:R_B + 4, 0:1]              # (1, 1) scalar output bias

    x = x_ref[...]                                # (tb, 768) bf16

    # Linear(768, 128pad) + ReLU  (bf16 MXU operands, f32 accumulation)
    h = jnp.dot(x, w1, preferred_element_type=jnp.float32) + b1
    h = jnp.maximum(h, 0.0).astype(jnp.bfloat16)
    # Linear(128pad, 128pad) + Tanh (EUP)
    h = jnp.dot(h, w2, preferred_element_type=jnp.float32) + b2
    h = jnp.tanh(h).astype(jnp.bfloat16)
    # Linear(128pad, 128pad) + ReLU
    h = jnp.dot(h, w3, preferred_element_type=jnp.float32) + b3
    h = jnp.maximum(h, 0.0).astype(jnp.bfloat16)  # (tb, 128) bf16
    # Linear(128pad, 1) as an NT matmul: (16,128) x (tb,128)^T -> (16, tb).
    # Row 0 is the logit ROW (lane-dense); rows 1..15 of w4 are zero padding.
    logits = lax.dot_general(w4, h, (((1,), (1,)), ((), ())),
                             preferred_element_type=jnp.float32)   # (16, tb)
    logit = logits[0:1, :] + b4                                    # (1, tb)
    # Sigmoid (exp lands on the EUP slot); full-width lane-dense store.
    o_ref[0] = 1.0 / (1.0 + jnp.exp(-logit))


def _tensorcores_per_device():
    """Best-effort count of TensorCores a 'parallel' grid axis can use."""
    try:
        kind = jax.devices()[0].device_kind.lower()
    except Exception:
        return 1
    if "v7" in kind:                      # v7x: 2 TensorCores per chip
        return 2
    if "v4" in kind or "v5p" in kind:     # megacore generations
        return 2
    return 1                              # v2/v3/v5e/v6e: single TensorCore


def _pick_grid(batch):
    cores = _tensorcores_per_device()
    padded = max(8, _ru(batch, 8))
    # Split across TensorCores only if each tile keeps >= 128 rows; otherwise a
    # single step (no per-step overhead, no duplicate weight reads) is best.
    steps = cores if (cores > 1 and padded >= cores * 128) else 1
    steps = max(steps, pl.cdiv(padded, MAX_TILE_B))
    tb = min(MAX_TILE_B, _ru(pl.cdiv(padded, steps), 8))
    steps = pl.cdiv(padded, tb)
    padded = steps * tb
    return padded, tb, steps


def net_forward(x, blob):
    assert x.shape[1] == IN_FEATURES
    batch = x.shape[0]
    padded_batch, tb, steps = _pick_grid(batch)

    x = x.astype(jnp.bfloat16)
    if padded_batch != batch:
        x = jnp.pad(x, ((0, padded_batch - batch), (0, 0)))

    flops = 2 * padded_batch * (IN_FEATURES * HIDDEN_PAD
                                + 2 * HIDDEN_PAD * HIDDEN_PAD
                                + 16 * HIDDEN_PAD)
    transcendentals = padded_batch * (HIDDEN_PAD + 1)        # tanh + sigmoid exp
    bytes_accessed = (2 * padded_batch * IN_FEATURES         # x (bf16)
                      + 2 * R_TOTAL * HIDDEN_PAD             # packed weights (bf16)
                      + 4 * steps * tb)                      # output (f32)

    out = pl.pallas_call(
        mlp_kernel,
        out_shape=jax.ShapeDtypeStruct((steps, 1, tb), jnp.float32),
        grid=(steps,),
        in_specs=[
            pl.BlockSpec((tb, IN_FEATURES), lambda i: (i, 0)),           # x tile
            pl.BlockSpec((R_TOTAL, HIDDEN_PAD), lambda i: (0, 0)),       # weight blob (resident)
        ],
        out_specs=pl.BlockSpec((1, 1, tb), lambda i: (i, 0, 0)),         # lane-dense row
        compiler_params=pltpu.CompilerParams(
            dimension_semantics=("parallel",)),               # both TCs on v7x/megacore
        cost_estimate=pl.CostEstimate(
            flops=flops, transcendentals=transcendentals,
            bytes_accessed=bytes_accessed),
    )(x, blob)
    return out.reshape(-1)[:batch].reshape(batch, 1)


def init_params(key):
    """PyTorch-style init. Weights stored as (in, out) so the kernel computes
    x @ W + b (equivalent to PyTorch's x @ W.T + b with W of shape (out, in))."""
    dims = [(IN_FEATURES, HIDDEN), (HIDDEN, HIDDEN), (HIDDEN, HIDDEN), (HIDDEN, 1)]
    params = []
    for fan_in, fan_out in dims:
        key, kw, kb = jax.random.split(key, 3)
        bound = 1.0 / jnp.sqrt(fan_in)
        w = jax.random.uniform(kw, (fan_in, fan_out), jnp.float32, -bound, bound)
        b = jax.random.uniform(kb, (fan_out,), jnp.float32, -bound, bound)
        params.append((w, b))
    return params


def pack_params(params):
    """Zero-pad hidden 100 -> 128 and pack every weight & bias into ONE bf16 blob
    of shape (R_TOTAL, 128) -> a single resident DMA.  Padded rows/lanes are
    exactly 0, so they stay 0 through ReLU/Tanh and contribute 0 to the final
    reduction: the logical output is unchanged."""
    (w1, b1), (w2, b2), (w3, b3), (w4, b4) = params
    blob = jnp.zeros((R_TOTAL, HIDDEN_PAD), jnp.float32)
    blob = blob.at[R_W1:R_W1 + IN_FEATURES, :HIDDEN].set(w1)
    blob = blob.at[R_W2:R_W2 + HIDDEN, :HIDDEN].set(w2)
    blob = blob.at[R_W3:R_W3 + HIDDEN, :HIDDEN].set(w3)
    blob = blob.at[R_W4, :HIDDEN].set(w4[:, 0])
    blob = blob.at[R_B + 0, :HIDDEN].set(b1)
    blob = blob.at[R_B + 1, :HIDDEN].set(b2)
    blob = blob.at[R_B + 2, :HIDDEN].set(b3)
    blob = blob.at[R_B + 3, 0].set(b4[0])
    return blob.astype(jnp.bfloat16)


def net_forward_ref(x, params):
    (w1, b1), (w2, b2), (w3, b3), (w4, b4) = params
    h = jnp.maximum(x @ w1 + b1, 0.0)
    h = jnp.tanh(h @ w2 + b2)
    h = jnp.maximum(h @ w3 + b3, 0.0)
    return jax.nn.sigmoid(h @ w4 + b4)


if __name__ == "__main__":
    key = jax.random.PRNGKey(0)
    key, kx = jax.random.split(key)
    x = jax.random.normal(kx, (BATCH, IN_FEATURES), jnp.float32)
    params = init_params(key)
    blob = pack_params(params)

    out = jax.block_until_ready(net_forward(x, blob))
    ref = net_forward_ref(x, params)

    assert out.shape == (BATCH, 1), out.shape
    err = float(jnp.max(jnp.abs(out - ref)))
    # bf16 operands / f32 accumulation -> loosened tolerance (per review).
    assert err < 2e-2, err
    print("KERNEL_OK")
</pallas_src>

<mosaic_0001>
module attributes {stable_mosaic.version = 11 : i64} {
  func.func @mlp_kernel(%arg0: i32, %arg1: memref<32x768xbf16, #tpu.memory_space<vmem>>, %arg2: memref<1056x128xbf16, #tpu.memory_space<vmem>>, %arg3: memref<1x1x32xf32, #tpu.memory_space<vmem>>) attributes {dimension_semantics = [#tpu.dimension_semantics<parallel>], iteration_bounds = array<i64: 1>, scalar_prefetch = 0 : i64, scratch_operands = 0 : i64, tpu.core_type = #tpu.core_type<tc>, window_params = [{transform_indices = @transform_0, window_bounds = array<i64: 32, 768>}, {pipeline_mode = #tpu.pipeline_mode<synchronous>, transform_indices = @transform_1, window_bounds = array<i64: 1056, 128>}, {transform_indices = @transform_2, window_bounds = array<i64: 1, 1, 32>}]} {
    %c0 = arith.constant 0 : index
    %c0_0 = arith.constant 0 : index
    %0 = vector.load %arg2[%c0, %c0_0] : memref<1056x128xbf16, #tpu.memory_space<vmem>>, vector<768x128xbf16>
    %c768 = arith.constant 768 : index
    %c0_1 = arith.constant 0 : index
    %1 = vector.load %arg2[%c768, %c0_1] : memref<1056x128xbf16, #tpu.memory_space<vmem>>, vector<128x128xbf16>
    %c896 = arith.constant 896 : index
    %c0_2 = arith.constant 0 : index
    %2 = vector.load %arg2[%c896, %c0_2] : memref<1056x128xbf16, #tpu.memory_space<vmem>>, vector<128x128xbf16>
    %c1024 = arith.constant 1024 : index
    %c0_3 = arith.constant 0 : index
    %3 = vector.load %arg2[%c1024, %c0_3] : memref<1056x128xbf16, #tpu.memory_space<vmem>>, vector<16x128xbf16>
    %c1040 = arith.constant 1040 : index
    %c0_4 = arith.constant 0 : index
    %4 = vector.load %arg2[%c1040, %c0_4] : memref<1056x128xbf16, #tpu.memory_space<vmem>>, vector<1x128xbf16>
    %c1041 = arith.constant 1041 : index
    %c0_5 = arith.constant 0 : index
    %5 = vector.load %arg2[%c1041, %c0_5] : memref<1056x128xbf16, #tpu.memory_space<vmem>>, vector<1x128xbf16>
    %c1042 = arith.constant 1042 : index
    %c0_6 = arith.constant 0 : index
    %6 = vector.load %arg2[%c1042, %c0_6] : memref<1056x128xbf16, #tpu.memory_space<vmem>>, vector<1x128xbf16>
    %c1043 = arith.constant 1043 : index
    %c0_7 = arith.constant 0 : index
    %7 = vector.load %arg2[%c1043, %c0_7] : memref<1056x128xbf16, #tpu.memory_space<vmem>>, vector<1x1xbf16>
    %c0_8 = arith.constant 0 : index
    %c0_9 = arith.constant 0 : index
    %8 = vector.load %arg1[%c0_8, %c0_9] : memref<32x768xbf16, #tpu.memory_space<vmem>>, vector<32x768xbf16>
    %cst = arith.constant dense<0.000000e+00> : vector<32x128xf32>
    %9 = tpu.matmul %8, %0, %cst {dimension_numbers = #tpu.dot_dimension_numbers<[1], [0], [0], [1], [0, 0, 1, 1], [], []>} : vector<32x768xbf16>, vector<768x128xbf16>, vector<32x128xf32> -> vector<32x128xf32>
    %10 = arith.extf %4 : vector<1x128xbf16> to vector<1x128xf32>
    %11 = vector.broadcast %10 : vector<1x128xf32> to vector<32x128xf32>
    %12 = arith.addf %9, %11 : vector<32x128xf32>
    %cst_10 = arith.constant 0.000000e+00 : f32
    %13 = vector.broadcast %cst_10 : f32 to vector<32x128xf32>
    %14 = arith.maximumf %12, %13 : vector<32x128xf32>
    %15 = arith.truncf %14 : vector<32x128xf32> to vector<32x128xbf16>
    %cst_11 = arith.constant dense<0.000000e+00> : vector<32x128xf32>
    %16 = tpu.matmul %15, %1, %cst_11 {dimension_numbers = #tpu.dot_dimension_numbers<[1], [0], [0], [1], [0, 0, 1, 1], [], []>} : vector<32x128xbf16>, vector<128x128xbf16>, vector<32x128xf32> -> vector<32x128xf32>
    %17 = arith.extf %5 : vector<1x128xbf16> to vector<1x128xf32>
    %18 = vector.broadcast %17 : vector<1x128xf32> to vector<32x128xf32>
    %19 = arith.addf %16, %18 : vector<32x128xf32>
    %20 = math.tanh %19 : vector<32x128xf32>
    %21 = arith.truncf %20 : vector<32x128xf32> to vector<32x128xbf16>
    %cst_12 = arith.constant dense<0.000000e+00> : vector<32x128xf32>
    %22 = tpu.matmul %21, %2, %cst_12 {dimension_numbers = #tpu.dot_dimension_numbers<[1], [0], [0], [1], [0, 0, 1, 1], [], []>} : vector<32x128xbf16>, vector<128x128xbf16>, vector<32x128xf32> -> vector<32x128xf32>
    %23 = arith.extf %6 : vector<1x128xbf16> to vector<1x128xf32>
    %24 = vector.broadcast %23 : vector<1x128xf32> to vector<32x128xf32>
    %25 = arith.addf %22, %24 : vector<32x128xf32>
    %cst_13 = arith.constant 0.000000e+00 : f32
    %26 = vector.broadcast %cst_13 : f32 to vector<32x128xf32>
    %27 = arith.maximumf %25, %26 : vector<32x128xf32>
    %28 = arith.truncf %27 : vector<32x128xf32> to vector<32x128xbf16>
    %cst_14 = arith.constant dense<0.000000e+00> : vector<16x32xf32>
    %29 = tpu.matmul %3, %28, %cst_14 {dimension_numbers = #tpu.dot_dimension_numbers<[1], [1], [0], [0], [0, 0, 1, 0], [], []>} : vector<16x128xbf16>, vector<32x128xbf16>, vector<16x32xf32> -> vector<16x32xf32>
    %30 = vector.extract_strided_slice %29 {offsets = [0, 0], sizes = [1, 32], strides = [1, 1]} : vector<16x32xf32> to vector<1x32xf32>
    %31 = arith.extf %7 : vector<1x1xbf16> to vector<1x1xf32>
    %32 = vector.broadcast %31 : vector<1x1xf32> to vector<1x32xf32>
    %33 = arith.addf %30, %32 : vector<1x32xf32>
    %cst_15 = arith.constant 0.000000e+00 : f32
    %34 = vector.broadcast %cst_15 : f32 to vector<1x32xf32>
    %35 = arith.subf %34, %33 : vector<1x32xf32>
    %36 = math.exp %35 : vector<1x32xf32>
    %cst_16 = arith.constant 1.000000e+00 : f32
    %37 = vector.broadcast %cst_16 : f32 to vector<1x32xf32>
    %38 = arith.addf %37, %36 : vector<1x32xf32>
    %cst_17 = arith.constant 1.000000e+00 : f32
    %39 = vector.broadcast %cst_17 : f32 to vector<1x32xf32>
    %40 = arith.divf %39, %38 : vector<1x32xf32>
    %c0_18 = arith.constant 0 : index
    %c0_19 = arith.constant 0 : index
    %c0_20 = arith.constant 0 : index
    %41 = vector.load %arg3[%c0_18, %c0_19, %c0_20] : memref<1x1x32xf32, #tpu.memory_space<vmem>>, vector<1x1x32xf32>
    %42 = vector.shape_cast %41 : vector<1x1x32xf32> to vector<1x32xf32>
    %43 = vector.shape_cast %40 : vector<1x32xf32> to vector<1x1x32xf32>
    tpu.vector_store %arg3[%c0_18, %c0_19, %c0_20], %43 {strides = array<i32>} : memref<1x1x32xf32, #tpu.memory_space<vmem>>, vector<1x1x32xf32>,
    return
  }
  func.func @transform_0(%arg0: i32) -> (i32, i32) {
    %c0_i32 = arith.constant 0 : i32
    %c0_i32_0 = arith.constant 0 : i32
    return %arg0, %c0_i32 : i32, i32
  }
  func.func @transform_1(%arg0: i32) -> (i32, i32) {
    %c0_i32 = arith.constant 0 : i32
    %c0_i32_0 = arith.constant 0 : i32
    %c0_i32_1 = arith.constant 0 : i32
    return %c0_i32, %c0_i32_0 : i32, i32
  }
  func.func @transform_2(%arg0: i32) -> (i32, i32, i32) {
    %c0_i32 = arith.constant 0 : i32
    %c0_i32_0 = arith.constant 0 : i32
    %c0_i32_1 = arith.constant 0 : i32
    return %arg0, %c0_i32, %c0_i32_0 : i32, i32, i32
  }
}

</mosaic_0001>

<llo_original>
// kernel: tpu_custom_call.1
$region0: #{tpu_custom_call.1}
  #allocation0 [shape = 'u32[]', space=smem, size = 0x4, offset = 0x4, fixed_abs, tag = 'smem constant byte address 0x4 - core index']
  #allocation1 [shape = 'u32[144,128]{1,0:T(1,128)}', space=vmem, size = 0x12000, scoped, tag = 'internal scratch']
  %s0 = inlined_call_operand.hbm [shape: bf16[32,768], index: 0, kind: input, shape index: {}]
  %s1 = inlined_call_operand.hbm [shape: bf16[1056,128], index: 1, kind: input, shape index: {}]
  %s2 = inlined_call_operand.hbm [shape: f32[1,1,32], index: 2, kind: output, shape index: {}]
  %s3 = sld [smem:[#allocation0]]
  $region26: #{tpu_custom_call.1} parent=0
    _
  %s5 = ssub.s32 1, %s3
  %s6 = scalar_select 0, %s5, %s3
  $region1: #{tpu_custom_call.1} parent=0
    #allocation2 [shape = 'u8[49152]{0}', space=vmem, size = 0xc000, scoped, tag = 'input window, operand 0, single buffered']
    #allocation3 [shape = 's32[1]{0}', space=sflag, size = 0x4, scoped, tag = 'scoped memory for tpu_custom_call.1']
    #allocation4 [shape = 's32[1]{0}', space=sflag, size = 0x4, scoped, tag = 'scoped memory for tpu_custom_call.1']
    #allocation5 [shape = 'u8[270336]{0}', space=vmem, size = 0x42000, scoped, tag = 'input window, operand 1, single buffered']
    #allocation6 [shape = 's32[1]{0}', space=sflag, size = 0x4, scoped, tag = 'scoped memory for tpu_custom_call.1']
    #allocation7 [shape = 'u8[512]{0}', space=vmem, size = 0x400, scoped, tag = 'output window, operand 0, single buffered']
    %7 = vsyncpa [#allocation3], 0
    %8 = vsyncpa [#allocation6], 0
    %9 = vsyncpa [#allocation4], 0
    // Predicated region
    $region2: #{tpu_custom_call.1} parent=1 // pred_check
      _
    $region3: #{tpu_custom_call.1} parent=1 // pred_check_branch
      %11 = sbr.rel (0) target = $region5
    $region4: #{tpu_custom_call.1} parent=1 // pred_region
      %s13 = ssub.s32 1536, 1536
      %14 = vsyncadd [#allocation3], %s13
      %s15 = sshll.u32 [#allocation2], 4
      %s16 = int_to_ptr.vmem [resolvable:$true] %s15
      %21 = dma.hbm_to_vmem [thread:$0]  %s0, 1536, %s16, [#allocation3], 384, 384, 24
    $region5: #{tpu_custom_call.1} parent=1 // pred_fallthru
      _
    // Predicated region
    $region6: #{tpu_custom_call.1} parent=1 // pred_check
      _
    $region7: #{tpu_custom_call.1} parent=1 // pred_check_branch
      %23 = sbr.rel (0) target = $region9
    $region8: #{tpu_custom_call.1} parent=1 // pred_region
      %s25 = ssub.s32 8448, 8448
      %26 = vsyncadd [#allocation6], %s25
      %s27 = sshll.u32 [#allocation5], 4
      %s28 = int_to_ptr.vmem [resolvable:$true] %s27
      %33 = dma.hbm_to_vmem [thread:$0]  %s1, 8448, %s28, [#allocation6], 64, 64, 4
    $region9: #{tpu_custom_call.1} parent=1 // pred_fallthru
      _
    // Predicated region
    $region10: #{tpu_custom_call.1} parent=1 // pred_check
      _
    $region11: #{tpu_custom_call.1} parent=1 // pred_check_branch
      %35 = sbr.rel (0) target = $region13
    $region12: #{tpu_custom_call.1} parent=1 // pred_region
      %36 = dma.done [#allocation3], 1536
    $region13: #{tpu_custom_call.1} parent=1 // pred_fallthru
      _
    // Predicated region
    $region14: #{tpu_custom_call.1} parent=1 // pred_check
      _
    $region15: #{tpu_custom_call.1} parent=1 // pred_check_branch
      %38 = sbr.rel (0) target = $region17
    $region16: #{tpu_custom_call.1} parent=1 // pred_region
      %39 = dma.done [#allocation6], 8448
    $region17: #{tpu_custom_call.1} parent=1 // pred_fallthru
      _
    %v41 = vld [vmem:[#allocation5] sm:$0xf]
    %v42 = vld [vmem:[#allocation5 + $0x4] sm:$0xf]
    %v43 = vld [vmem:[#allocation5 + $0x8] sm:$0xf]
    %v44 = vld [vmem:[#allocation5 + $0xc] sm:$0xf]
    %v45 = vld [vmem:[#allocation5 + $0x10] sm:$0xf]
    %v46 = vld [vmem:[#allocation5 + $0x14] sm:$0xf]
    %v47 = vld [vmem:[#allocation5 + $0x18] sm:$0xf]
    %v48 = vld [vmem:[#allocation5 + $0x1c] sm:$0xf]
    %v49 = vld [vmem:[#allocation5 + $0x20] sm:$0xf]
    %v50 = vld [vmem:[#allocation5 + $0x24] sm:$0xf]
    %v51 = vld [vmem:[#allocation5 + $0x28] sm:$0xf]
    %v52 = vld [vmem:[#allocation5 + $0x2c] sm:$0xf]
    %v53 = vld [vmem:[#allocation5 + $0x30] sm:$0xf]
    %v54 = vld [vmem:[#allocation5 + $0x34] sm:$0xf]
    %v55 = vld [vmem:[#allocation5 + $0x38] sm:$0xf]
    %v56 = vld [vmem:[#allocation5 + $0x3c] sm:$0xf]
    %v57 = vld [vmem:[#allocation5 + $0x40] sm:$0xf]
    %v58 = vld [vmem:[#allocation5 + $0x44] sm:$0xf]
    %v59 = vld [vmem:[#allocation5 + $0x48] sm:$0xf]
    %v60 = vld [vmem:[#allocation5 + $0x4c] sm:$0xf]
    %v61 = vld [vmem:[#allocation5 + $0x50] sm:$0xf]
    %v62 = vld [vmem:[#allocation5 + $0x54] sm:$0xf]
    %v63 = vld [vmem:[#allocation5 + $0x58] sm:$0xf]
    %v64 = vld [vmem:[#allocation5 + $0x5c] sm:$0xf]
    %v65 = vld [vmem:[#allocation5 + $0x60] sm:$0xf]
    %v66 = vld [vmem:[#allocation5 + $0x64] sm:$0xf]
    %v67 = vld [vmem:[#allocation5 + $0x68] sm:$0xf]
    %v68 = vld [vmem:[#allocation5 + $0x6c] sm:$0xf]
    %v69 = vld [vmem:[#allocation5 + $0x70] sm:$0xf]
    %v70 = vld [vmem:[#allocation5 + $0x74] sm:$0xf]
    %v71 = vld [vmem:[#allocation5 + $0x78] sm:$0xf]
    %v72 = vld [vmem:[#allocation5 + $0x7c] sm:$0xf]
    %v73 = vld [vmem:[#allocation5 + $0x80] sm:$0xf]
    %v74 = vld [vmem:[#allocation5 + $0x84] sm:$0xf]
    %v75 = vld [vmem:[#allocation5 + $0x88] sm:$0xf]
    %v76 = vld [vmem:[#allocation5 + $0x8c] sm:$0xf]
    %v77 = vld [vmem:[#allocation5 + $0x90] sm:$0xf]
    %v78 = vld [vmem:[#allocation5 + $0x94] sm:$0xf]
    %v79 = vld [vmem:[#allocation5 + $0x98] sm:$0xf]
    %v80 = vld [vmem:[#allocation5 + $0x9c] sm:$0xf]
    %v81 = vld [vmem:[#allocation5 + $0xa0] sm:$0xf]
    %v82 = vld [vmem:[#allocation5 + $0xa4] sm:$0xf]
    %v83 = vld [vmem:[#allocation5 + $0xa8] sm:$0xf]
    %v84 = vld [vmem:[#allocation5 + $0xac] sm:$0xf]
    %v85 = vld [vmem:[#allocation5 + $0xb0] sm:$0xf]
    %v86 = vld [vmem:[#allocation5 + $0xb4] sm:$0xf]
    %v87 = vld [vmem:[#allocation5 + $0xb8] sm:$0xf]
    %v88 = vld [vmem:[#allocation5 + $0xbc] sm:$0xf]
    %v89 = vld [vmem:[#allocation5 + $0xc0] sm:$0xf]
    %v90 = vld [vmem:[#allocation5 + $0xc4] sm:$0xf]
    %v91 = vld [vmem:[#allocation5 + $0xc8] sm:$0xf]
    %v92 = vld [vmem:[#allocation5 + $0xcc] sm:$0xf]
    %v93 = vld [vmem:[#allocation5 + $0xd0] sm:$0xf]
    %v94 = vld [vmem:[#allocation5 + $0xd4] sm:$0xf]
    %v95 = vld [vmem:[#allocation5 + $0xd8] sm:$0xf]
    %v96 = vld [vmem:[#allocation5 + $0xdc] sm:$0xf]
    %v97 = vld [vmem:[#allocation5 + $0xe0] sm:$0xf]
    %v98 = vld [vmem:[#allocation5 + $0xe4] sm:$0xf]
    %v99 = vld [vmem:[#allocation5 + $0xe8] sm:$0xf]
    %v100 = vld [vmem:[#allocation5 + $0xec] sm:$0xf]
    %v101 = vld [vmem:[#allocation5 + $0xf0] sm:$0xf]
    %v102 = vld [vmem:[#allocation5 + $0xf4] sm:$0xf]
    %v103 = vld [vmem:[#allocation5 + $0xf8] sm:$0xf]
    %v104 = vld [vmem:[#allocation5 + $0xfc] sm:$0xf]
    %v105 = vld [vmem:[#allocation5 + $0x100] sm:$0xf]
    %v106 = vld [vmem:[#allocation5 + $0x104] sm:$0xf]
    %v107 = vld [vmem:[#allocation5 + $0x108] sm:$0xf]
    %v108 = vld [vmem:[#allocation5 + $0x10c] sm:$0xf]
    %v109 = vld [vmem:[#allocation5 + $0x110] sm:$0xf]
    %v110 = vld [vmem:[#allocation5 + $0x114] sm:$0xf]
    %v111 = vld [vmem:[#allocation5 + $0x118] sm:$0xf]
    %v112 = vld [vmem:[#allocation5 + $0x11c] sm:$0xf]
    %v113 = vld [vmem:[#allocation5 + $0x120] sm:$0xf]
    %v114 = vld [vmem:[#allocation5 + $0x124] sm:$0xf]
    %v115 = vld [vmem:[#allocation5 + $0x128] sm:$0xf]
    %v116 = vld [vmem:[#allocation5 + $0x12c] sm:$0xf]
    %v117 = vld [vmem:[#allocation5 + $0x130] sm:$0xf]
    %v118 = vld [vmem:[#allocation5 + $0x134] sm:$0xf]
    %v119 = vld [vmem:[#allocation5 + $0x138] sm:$0xf]
    %v120 = vld [vmem:[#allocation5 + $0x13c] sm:$0xf]
    %v121 = vld [vmem:[#allocation5 + $0x140] sm:$0xf]
    %v122 = vld [vmem:[#allocation5 + $0x144] sm:$0xf]
    %v123 = vld [vmem:[#allocation5 + $0x148] sm:$0xf]
    %v124 = vld [vmem:[#allocation5 + $0x14c] sm:$0xf]
    %v125 = vld [vmem:[#allocation5 + $0x150] sm:$0xf]
    %v126 = vld [vmem:[#allocation5 + $0x154] sm:$0xf]
    %v127 = vld [vmem:[#allocation5 + $0x158] sm:$0xf]
    %v128 = vld [vmem:[#allocation5 + $0x15c] sm:$0xf]
    %v129 = vld [vmem:[#allocation5 + $0x160] sm:$0xf]
    %v130 = vld [vmem:[#allocation5 + $0x164] sm:$0xf]
    %v131 = vld [vmem:[#allocation5 + $0x168] sm:$0xf]
    %v132 = vld [vmem:[#allocation5 + $0x16c] sm:$0xf]
    %v133 = vld [vmem:[#allocation5 + $0x170] sm:$0xf]
    %v134 = vld [vmem:[#allocation5 + $0x174] sm:$0xf]
    %v135 = vld [vmem:[#allocation5 + $0x178] sm:$0xf]
    %v136 = vld [vmem:[#allocation5 + $0x17c] sm:$0xf]
    %v137 = vld [vmem:[#allocation5 + $0x180] sm:$0xf]
    %v138 = vld [vmem:[#allocation5 + $0x184] sm:$0xf]
    %v139 = vld [vmem:[#allocation5 + $0x188] sm:$0xf]
    %v140 = vld [vmem:[#allocation5 + $0x18c] sm:$0xf]
    %v141 = vld [vmem:[#allocation5 + $0x190] sm:$0xf]
    %v142 = vld [vmem:[#allocation5 + $0x194] sm:$0xf]
    %v143 = vld [vmem:[#allocation5 + $0x198] sm:$0xf]
    %v144 = vld [vmem:[#allocation5 + $0x19c] sm:$0xf]
    %v145 = vld [vmem:[#allocation5 + $0x1a0] sm:$0xf]
    %v146 = vld [vmem:[#allocation5 + $0x1a4] sm:$0xf]
    %v147 = vld [vmem:[#allocation5 + $0x1a8] sm:$0xf]
    %v148 = vld [vmem:[#allocation5 + $0x1ac] sm:$0xf]
    %v149 = vld [vmem:[#allocation5 + $0x1b0] sm:$0xf]
    %v150 = vld [vmem:[#allocation5 + $0x1b4] sm:$0xf]
    %v151 = vld [vmem:[#allocation5 + $0x1b8] sm:$0xf]
    %v152 = vld [vmem:[#allocation5 + $0x1bc] sm:$0xf]
    %v153 = vld [vmem:[#allocation5 + $0x1c0] sm:$0xf]
    %v154 = vld [vmem:[#allocation5 + $0x1c4] sm:$0xf]
    %v155 = vld [vmem:[#allocation5 + $0x1c8] sm:$0xf]
    %v156 = vld [vmem:[#allocation5 + $0x1cc] sm:$0xf]
    %v157 = vld [vmem:[#allocation5 + $0x1d0] sm:$0xf]
    %v158 = vld [vmem:[#allocation5 + $0x1d4] sm:$0xf]
    %v159 = vld [vmem:[#allocation5 + $0x1d8] sm:$0xf]
    %v160 = vld [vmem:[#allocation5 + $0x1dc] sm:$0xf]
    %v161 = vld [vmem:[#allocation5 + $0x1e0] sm:$0xf]
    %v162 = vld [vmem:[#allocation5 + $0x1e4] sm:$0xf]
    %v163 = vld [vmem:[#allocation5 + $0x1e8] sm:$0xf]
    %v164 = vld [vmem:[#allocation5 + $0x1ec] sm:$0xf]
    %v165 = vld [vmem:[#allocation5 + $0x1f0] sm:$0xf]
    %v166 = vld [vmem:[#allocation5 + $0x1f4] sm:$0xf]
    %v167 = vld [vmem:[#allocation5 + $0x1f8] sm:$0xf]
    %v168 = vld [vmem:[#allocation5 + $0x1fc] sm:$0xf]
    %v169 = vld [vmem:[#allocation5 + $0x200] sm:$0xf]
    %v170 = vld [vmem:[#allocation5 + $0x204] sm:$0xf]
    %v171 = vld [vmem:[#allocation5 + $0x208] sm:$0x1]
    %v172 = vld [vmem:[#allocation5 + $0x208] sm:$0x2]
    %v173 = vld [vmem:[#allocation2] sm:$0xff]
    %v174 = vld [vmem:[#allocation2 + $0x8] sm:$0xff]
    %v175 = vld [vmem:[#allocation2 + $0x10] sm:$0xff]
    %v176 = vld [vmem:[#allocation2 + $0x18] sm:$0xff]
    %v177 = vld [vmem:[#allocation2 + $0x20] sm:$0xff]
    %v178 = vld [vmem:[#allocation2 + $0x28] sm:$0xff]
    %v179 = vld [vmem:[#allocation2 + $0x30] sm:$0xff]
    %v180 = vld [vmem:[#allocation2 + $0x38] sm:$0xff]
    %v181 = vld [vmem:[#allocation2 + $0x40] sm:$0xff]
    %v182 = vld [vmem:[#allocation2 + $0x48] sm:$0xff]
    %v183 = vld [vmem:[#allocation2 + $0x50] sm:$0xff]
    %v184 = vld [vmem:[#allocation2 + $0x58] sm:$0xff]
    %v185 = vunpack.c.l.bf16 %v171
    %v186 = vlaneseq
    %v187 = vshrl.u32 %v186, 7
    %v188 = vsub.s32 0, %v187
    %v189 = vrot.slane %v185, %v188
    %v202 = vunpack.c.l.b16 %v173
    %v203 = vunpack.c.h.b16 %v173
    %v204 = vunpack.c.l.b16 %v174
    %v205 = vunpack.c.h.b16 %v174
    %v206 = vunpack.c.l.b16 %v175
    %v207 = vunpack.c.h.b16 %v175
    %v208 = vunpack.c.l.b16 %v176
    %v209 = vunpack.c.h.b16 %v176
    %v210 = vunpack.c.l.b16 %v177
    %v211 = vunpack.c.h.b16 %v177
    %v212 = vunpack.c.l.b16 %v178
    %v213 = vunpack.c.h.b16 %v178
    %v214 = vunpack.c.l.b16 %v179
    %v215 = vunpack.c.h.b16 %v179
    %v216 = vunpack.c.l.b16 %v180
    %v217 = vunpack.c.h.b16 %v180
    %v218 = vunpack.c.l.b16 %v181
    %v219 = vunpack.c.h.b16 %v181
    %v220 = vunpack.c.l.b16 %v182
    %v221 = vunpack.c.h.b16 %v182
    %v222 = vunpack.c.l.b16 %v183
    %v223 = vunpack.c.h.b16 %v183
    %v224 = vunpack.c.l.b16 %v184
    %v225 = vunpack.c.h.b16 %v184
    %v226 = vpack.c.b16 %v208, %v202
    %v227 = vpack.c.b16 %v209, %v203
    %v228 = vpack.c.b16 %v210, %v204
    %v229 = vpack.c.b16 %v211, %v205
    %v230 = vpack.c.b16 %v212, %v206
    %v231 = vpack.c.b16 %v213, %v207
    %v232 = vpack.c.b16 %v220, %v214
    %v233 = vpack.c.b16 %v221, %v215
    %v234 = vpack.c.b16 %v222, %v216
    %v235 = vpack.c.b16 %v223, %v217
    %v236 = vpack.c.b16 %v224, %v218
    %v237 = vpack.c.b16 %v225, %v219
    %v346 = vunpack.c.l.b16 %v41
    %v347 = vunpack.c.l.b16 %v42
    %v348 = vunpack.c.l.b16 %v43
    %v349 = vunpack.c.l.b16 %v44
    %v350 = vunpack.c.l.b16 %v45
    %v351 = vunpack.c.l.b16 %v46
    %v352 = vunpack.c.l.b16 %v47
    %v353 = vunpack.c.l.b16 %v48
    %v354 = vunpack.c.l.b16 %v49
    %v355 = vunpack.c.l.b16 %v50
    %v356 = vunpack.c.l.b16 %v51
    %v357 = vunpack.c.l.b16 %v52
    %v358 = vunpack.c.l.b16 %v53
    %v359 = vunpack.c.l.b16 %v54
    %v360 = vunpack.c.l.b16 %v55
    %v361 = vunpack.c.l.b16 %v56
    %v362 = vunpack.c.l.b16 %v57
    %v363 = vunpack.c.l.b16 %v58
    %v364 = vunpack.c.l.b16 %v59
    %v365 = vunpack.c.l.b16 %v60
    %v366 = vunpack.c.l.b16 %v61
    %v367 = vunpack.c.l.b16 %v62
    %v368 = vunpack.c.l.b16 %v63
    %v369 = vunpack.c.l.b16 %v64
    %v370 = vunpack.c.l.b16 %v65
    %v371 = vunpack.c.l.b16 %v66
    %v372 = vunpack.c.l.b16 %v67
    %v373 = vunpack.c.l.b16 %v68
    %v374 = vunpack.c.l.b16 %v69
    %v375 = vunpack.c.l.b16 %v70
    %v376 = vunpack.c.l.b16 %v71
    %v377 = vunpack.c.l.b16 %v72
    %v378 = vunpack.c.l.b16 %v73
    %v379 = vunpack.c.l.b16 %v74
    %v380 = vunpack.c.l.b16 %v75
    %v381 = vunpack.c.l.b16 %v76
    %v382 = vunpack.c.l.b16 %v77
    %v383 = vunpack.c.l.b16 %v78
    %v384 = vunpack.c.l.b16 %v79
    %v385 = vunpack.c.l.b16 %v80
    %v386 = vunpack.c.l.b16 %v81
    %v387 = vunpack.c.l.b16 %v82
    %v388 = vunpack.c.l.b16 %v83
    %v389 = vunpack.c.l.b16 %v84
    %v390 = vunpack.c.l.b16 %v85
    %v391 = vunpack.c.l.b16 %v86
    %v392 = vunpack.c.l.b16 %v87
    %v393 = vunpack.c.l.b16 %v88
    %v394 = vunpack.c.l.b16 %v89
    %v395 = vunpack.c.l.b16 %v90
    %v396 = vunpack.c.l.b16 %v91
    %v397 = vunpack.c.l.b16 %v92
    %v398 = vunpack.c.l.b16 %v93
    %v399 = vunpack.c.l.b16 %v94
    %v400 = vunpack.c.l.b16 %v95
    %v401 = vunpack.c.l.b16 %v96
    %v402 = vunpack.c.l.b16 %v97
    %v403 = vunpack.c.l.b16 %v98
    %v404 = vunpack.c.l.b16 %v99
    %v405 = vunpack.c.l.b16 %v100
    %v406 = vunpack.c.l.b16 %v101
    %v407 = vunpack.c.l.b16 %v102
    %v408 = vunpack.c.l.b16 %v103
    %v409 = vunpack.c.l.b16 %v104
    %v410 = vunpack.c.l.b16 %v105
    %v411 = vunpack.c.l.b16 %v106
    %v412 = vunpack.c.l.b16 %v107
    %v413 = vunpack.c.l.b16 %v108
    %v414 = vunpack.c.l.b16 %v109
    %v415 = vunpack.c.l.b16 %v110
    %v416 = vunpack.c.l.b16 %v111
    %v417 = vunpack.c.l.b16 %v112
    %v418 = vunpack.c.l.b16 %v113
    %v419 = vunpack.c.l.b16 %v114
    %v420 = vunpack.c.l.b16 %v115
    %v421 = vunpack.c.l.b16 %v116
    %v422 = vunpack.c.l.b16 %v117
    %v423 = vunpack.c.l.b16 %v118
    %v424 = vunpack.c.l.b16 %v119
    %v425 = vunpack.c.l.b16 %v120
    %v426 = vunpack.c.l.b16 %v121
    %v427 = vunpack.c.l.b16 %v122
    %v428 = vunpack.c.l.b16 %v123
    %v429 = vunpack.c.l.b16 %v124
    %v430 = vunpack.c.l.b16 %v125
    %v431 = vunpack.c.l.b16 %v126
    %v432 = vunpack.c.l.b16 %v127
    %v433 = vunpack.c.l.b16 %v128
    %v434 = vunpack.c.l.b16 %v129
    %v435 = vunpack.c.l.b16 %v130
    %v436 = vunpack.c.l.b16 %v131
    %v437 = vunpack.c.l.b16 %v132
    %v438 = vunpack.c.l.b16 %v133
    %v439 = vunpack.c.l.b16 %v134
    %v440 = vunpack.c.l.b16 %v135
    %v441 = vunpack.c.l.b16 %v136
    %v442 = vpack.c.b16 %v347, %v346
    %v443 = vpack.c.b16 %v349, %v348
    %v444 = vpack.c.b16 %v351, %v350
    %v445 = vpack.c.b16 %v353, %v352
    %v446 = vpack.c.b16 %v355, %v354
    %v447 = vpack.c.b16 %v357, %v356
    %v448 = vpack.c.b16 %v359, %v358
    %v449 = vpack.c.b16 %v361, %v360
    %v450 = vpack.c.b16 %v363, %v362
    %v451 = vpack.c.b16 %v365, %v364
    %v452 = vpack.c.b16 %v367, %v366
    %v453 = vpack.c.b16 %v369, %v368
    %v454 = vpack.c.b16 %v371, %v370
    %v455 = vpack.c.b16 %v373, %v372
    %v456 = vpack.c.b16 %v375, %v374
    %v457 = vpack.c.b16 %v377, %v376
    %v458 = vpack.c.b16 %v379, %v378
    %v459 = vpack.c.b16 %v381, %v380
    %v460 = vpack.c.b16 %v383, %v382
    %v461 = vpack.c.b16 %v385, %v384
    %v462 = vpack.c.b16 %v387, %v386
    %v463 = vpack.c.b16 %v389, %v388
    %v464 = vpack.c.b16 %v391, %v390
    %v465 = vpack.c.b16 %v393, %v392
    %v466 = vpack.c.b16 %v395, %v394
    %v467 = vpack.c.b16 %v397, %v396
    %v468 = vpack.c.b16 %v399, %v398
    %v469 = vpack.c.b16 %v401, %v400
    %v470 = vpack.c.b16 %v403, %v402
    %v471 = vpack.c.b16 %v405, %v404
    %v472 = vpack.c.b16 %v407, %v406
    %v473 = vpack.c.b16 %v409, %v408
    %v474 = vpack.c.b16 %v411, %v410
    %v475 = vpack.c.b16 %v413, %v412
    %v476 = vpack.c.b16 %v415, %v414
    %v477 = vpack.c.b16 %v417, %v416
    %v478 = vpack.c.b16 %v419, %v418
    %v479 = vpack.c.b16 %v421, %v420
    %v480 = vpack.c.b16 %v423, %v422
    %v481 = vpack.c.b16 %v425, %v424
    %v482 = vpack.c.b16 %v427, %v426
    %v483 = vpack.c.b16 %v429, %v428
    %v484 = vpack.c.b16 %v431, %v430
    %v485 = vpack.c.b16 %v433, %v432
    %v486 = vpack.c.b16 %v435, %v434
    %v487 = vpack.c.b16 %v437, %v436
    %v488 = vpack.c.b16 %v439, %v438
    %v489 = vpack.c.b16 %v441, %v440
    %538 = vmatprep.subr.bf16.mxu0 0
    %539 = vmatpush1.bf16.msra.mxu0 %v449
    %540 = vmatprep.subr.bf16.mxu0 0
    %541 = vmatpush1.bf16.msra.mxu0 %v448
    %542 = vmatprep.subr.bf16.mxu0 0
    %543 = vmatpush1.bf16.msra.mxu0 %v447
    %544 = vmatprep.subr.bf16.mxu0 0
    %545 = vmatpush1.bf16.msra.mxu0 %v446
    %546 = vmatprep.subr.bf16.mxu0 0
    %547 = vmatpush1.bf16.msra.mxu0 %v445
    %548 = vmatprep.subr.bf16.mxu0 0
    %549 = vmatpush1.bf16.msra.mxu0 %v444
    %550 = vmatprep.subr.bf16.mxu0 0
    %551 = vmatpush1.bf16.msra.mxu0 %v443
    %552 = vmatprep.subr.bf16.mxu0 0
    %553 = vmatpush1.bf16.msra.mxu0 %v442
    %554 = vmatprep.subr.bf16.mxu0 0
    %555 = vmatpush2.bf16.msra.mxu0 %v457
    %556 = vmatprep.subr.bf16.mxu0 0
    %557 = vmatpush2.bf16.msra.mxu0 %v456
    %558 = vmatprep.subr.bf16.mxu0 0
    %559 = vmatpush2.bf16.msra.mxu0 %v455
    %560 = vmatprep.subr.bf16.mxu0 0
    %561 = vmatpush2.bf16.msra.mxu0 %v454
    %562 = vmatprep.subr.bf16.mxu0 0
    %563 = vmatpush2.bf16.msra.mxu0 %v453
    %564 = vmatprep.subr.bf16.mxu0 0
    %565 = vmatpush2.bf16.msra.mxu0 %v452
    %566 = vmatprep.subr.bf16.mxu0 0
    %567 = vmatpush2.bf16.msra.mxu0 %v451
    %568 = vmatprep.subr.bf16.mxu0 0
    %569 = vmatpush2.bf16.msra.mxu0 %v450
    %570 = vmatprep.mubr.bf16.mxu0 %v227
    %571 = vmatmul.mubr.bf16.gmra.mxu0 %v226
    %v572 = vpop.f32.mrf.mxu0
    %v573 = vadd.f32 %v189, %v572
    %v574 = vpop.f32.mrf.mxu0
    %v575 = vpop.f32.mrf.mxu0
    %v576 = vadd.f32 %v189, %v575
    %v577 = vpop.f32.mrf.mxu0
    %578 = vmatprep.mubr.bf16.mxu0 %v233
    %579 = vmatmul.mubr.bf16.gmra.mxu0 %v232
    %v580 = vpop.f32.mrf.mxu0
    %v581 = vadd.f32 %v189, %v580
    %v582 = vpop.f32.mrf.mxu0
    %v583 = vpop.f32.mrf.mxu0
    %v584 = vadd.f32 %v189, %v583
    %v585 = vpop.f32.mrf.mxu0
    %586 = vdwg.mxu0
    %587 = vmatprep.subr.bf16.mxu0 0
    %588 = vmatpush1.bf16.msra.mxu0 %v465
    %589 = vmatprep.subr.bf16.mxu0 0
    %590 = vmatpush1.bf16.msra.mxu0 %v464
    %591 = vmatprep.subr.bf16.mxu0 0
    %592 = vmatpush1.bf16.msra.mxu0 %v463
    %593 = vmatprep.subr.bf16.mxu0 0
    %594 = vmatpush1.bf16.msra.mxu0 %v462
    %595 = vmatprep.subr.bf16.mxu0 0
    %596 = vmatpush1.bf16.msra.mxu0 %v461
    %597 = vmatprep.subr.bf16.mxu0 0
    %598 = vmatpush1.bf16.msra.mxu0 %v460
    %599 = vmatprep.subr.bf16.mxu0 0
    %600 = vmatpush1.bf16.msra.mxu0 %v459
    %601 = vmatprep.subr.bf16.mxu0 0
    %602 = vmatpush1.bf16.msra.mxu0 %v458
    %603 = vmatprep.subr.bf16.mxu0 0
    %604 = vmatpush2.bf16.msra.mxu0 %v473
    %605 = vmatprep.subr.bf16.mxu0 0
    %606 = vmatpush2.bf16.msra.mxu0 %v472
    %607 = vmatprep.subr.bf16.mxu0 0
    %608 = vmatpush2.bf16.msra.mxu0 %v471
    %609 = vmatprep.subr.bf16.mxu0 0
    %610 = vmatpush2.bf16.msra.mxu0 %v470
    %611 = vmatprep.subr.bf16.mxu0 0
    %612 = vmatpush2.bf16.msra.mxu0 %v469
    %613 = vmatprep.subr.bf16.mxu0 0
    %614 = vmatpush2.bf16.msra.mxu0 %v468
    %615 = vmatprep.subr.bf16.mxu0 0
    %616 = vmatpush2.bf16.msra.mxu0 %v467
    %617 = vmatprep.subr.bf16.mxu0 0
    %618 = vmatpush2.bf16.msra.mxu0 %v466
    %619 = vmatprep.mubr.bf16.mxu0 %v229
    %620 = vmatmul.mubr.bf16.gmra.mxu0 %v228
    %v621 = vpop.f32.mrf.mxu0
    %v622 = vadd.f32 %v573, %v621
    %v623 = vpop.f32.mrf.mxu0
    %v624 = vpop.f32.mrf.mxu0
    %v625 = vadd.f32 %v576, %v624
    %v626 = vpop.f32.mrf.mxu0
    %627 = vmatprep.mubr.bf16.mxu0 %v235
    %628 = vmatmul.mubr.bf16.gmra.mxu0 %v234
    %v629 = vpop.f32.mrf.mxu0
    %v630 = vadd.f32 %v581, %v629
    %v631 = vpop.f32.mrf.mxu0
    %v632 = vpop.f32.mrf.mxu0
    %v633 = vadd.f32 %v584, %v632
    %v634 = vpop.f32.mrf.mxu0
    %635 = vdwg.mxu0
    %636 = vmatprep.subr.bf16.mxu0 0
    %637 = vmatpush1.bf16.msra.mxu0 %v481
    %638 = vmatprep.subr.bf16.mxu0 0
    %639 = vmatpush1.bf16.msra.mxu0 %v480
    %640 = vmatprep.subr.bf16.mxu0 0
    %641 = vmatpush1.bf16.msra.mxu0 %v479
    %642 = vmatprep.subr.bf16.mxu0 0
    %643 = vmatpush1.bf16.msra.mxu0 %v478
    %644 = vmatprep.subr.bf16.mxu0 0
    %645 = vmatpush1.bf16.msra.mxu0 %v477
    %646 = vmatprep.subr.bf16.mxu0 0
    %647 = vmatpush1.bf16.msra.mxu0 %v476
    %648 = vmatprep.subr.bf16.mxu0 0
    %649 = vmatpush1.bf16.msra.mxu0 %v475
    %650 = vmatprep.subr.bf16.mxu0 0
    %651 = vmatpush1.bf16.msra.mxu0 %v474
    %652 = vmatprep.subr.bf16.mxu0 0
    %653 = vmatpush2.bf16.msra.mxu0 %v489
    %654 = vmatprep.subr.bf16.mxu0 0
    %655 = vmatpush2.bf16.msra.mxu0 %v488
    %656 = vmatprep.subr.bf16.mxu0 0
    %657 = vmatpush2.bf16.msra.mxu0 %v487
    %658 = vmatprep.subr.bf16.mxu0 0
    %659 = vmatpush2.bf16.msra.mxu0 %v486
    %660 = vmatprep.subr.bf16.mxu0 0
    %661 = vmatpush2.bf16.msra.mxu0 %v485
    %662 = vmatprep.subr.bf16.mxu0 0
    %663 = vmatpush2.bf16.msra.mxu0 %v484
    %664 = vmatprep.subr.bf16.mxu0 0
    %665 = vmatpush2.bf16.msra.mxu0 %v483
    %666 = vmatprep.subr.bf16.mxu0 0
    %667 = vmatpush2.bf16.msra.mxu0 %v482
    %668 = vmatprep.mubr.bf16.mxu0 %v231
    %669 = vmatmul.mubr.bf16.gmra.mxu0 %v230
    %v670 = vpop.f32.mrf.mxu0
    %v671 = vadd.f32 %v622, %v670
    %v672 = vpop.f32.mrf.mxu0
    %v673 = vpop.f32.mrf.mxu0
    %v674 = vadd.f32 %v625, %v673
    %v675 = vpop.f32.mrf.mxu0
    %676 = vmatprep.mubr.bf16.mxu0 %v237
    %677 = vmatmul.mubr.bf16.gmra.mxu0 %v236
    %v678 = vpop.f32.mrf.mxu0
    %v679 = vadd.f32 %v630, %v678
    %v680 = vpop.f32.mrf.mxu0
    %v681 = vpop.f32.mrf.mxu0
    %v682 = vadd.f32 %v633, %v681
    %v683 = vpop.f32.mrf.mxu0
    %684 = vdwg.mxu0
    %v685 = vmax.f32 %v671, 0.0
    %v686 = vmax.f32 %v674, 0.0
    %v687 = vmax.f32 %v679, 0.0
    %v688 = vmax.f32 %v682, 0.0
    %v689 = vpack.c.bf16 %v686, %v685
    %v690 = vpack.c.bf16 %v688, %v687
    %v691 = vlaneseq
    %v692 = vshrl.u32 %v691, 7
    %v693 = vsub.s32 1, %v692
    %v694 = vrot.slane %v185, %v693
    %v711 = vunpack.c.l.b16 %v137
    %v712 = vunpack.c.l.b16 %v138
    %v713 = vunpack.c.l.b16 %v139
    %v714 = vunpack.c.l.b16 %v140
    %v715 = vunpack.c.l.b16 %v141
    %v716 = vunpack.c.l.b16 %v142
    %v717 = vunpack.c.l.b16 %v143
    %v718 = vunpack.c.l.b16 %v144
    %v719 = vunpack.c.l.b16 %v145
    %v720 = vunpack.c.l.b16 %v146
    %v721 = vunpack.c.l.b16 %v147
    %v722 = vunpack.c.l.b16 %v148
    %v723 = vunpack.c.l.b16 %v149
    %v724 = vunpack.c.l.b16 %v150
    %v725 = vunpack.c.l.b16 %v151
    %v726 = vunpack.c.l.b16 %v152
    %v727 = vpack.c.b16 %v712, %v711
    %v728 = vpack.c.b16 %v714, %v713
    %v729 = vpack.c.b16 %v716, %v715
    %v730 = vpack.c.b16 %v718, %v717
    %v731 = vpack.c.b16 %v720, %v719
    %v732 = vpack.c.b16 %v722, %v721
    %v733 = vpack.c.b16 %v724, %v723
    %v734 = vpack.c.b16 %v726, %v725
    %743 = vmatprep.subr.bf16.mxu0 0
    %744 = vmatpush1.bf16.msra.mxu0 %v734
    %745 = vmatprep.subr.bf16.mxu0 0
    %746 = vmatpush1.bf16.msra.mxu0 %v733
    %747 = vmatprep.subr.bf16.mxu0 0
    %748 = vmatpush1.bf16.msra.mxu0 %v732
    %749 = vmatprep.subr.bf16.mxu0 0
    %750 = vmatpush1.bf16.msra.mxu0 %v731
    %751 = vmatprep.subr.bf16.mxu0 0
    %752 = vmatpush1.bf16.msra.mxu0 %v730
    %753 = vmatprep.subr.bf16.mxu0 0
    %754 = vmatpush1.bf16.msra.mxu0 %v729
    %755 = vmatprep.subr.bf16.mxu0 0
    %756 = vmatpush1.bf16.msra.mxu0 %v728
    %757 = vmatprep.subr.bf16.mxu0 0
    %758 = vmatpush1.bf16.msra.mxu0 %v727
    %759 = vmatprep.subr.bf16.mxu0 0
    %760 = vmatpush2.bf16.msra.mxu0 0
    %761 = vmatprep.subr.bf16.mxu0 0
    %762 = vmatpush2.bf16.msra.mxu0 0
    %763 = vmatprep.subr.bf16.mxu0 0
    %764 = vmatpush2.bf16.msra.mxu0 0
    %765 = vmatprep.subr.bf16.mxu0 0
    %766 = vmatpush2.bf16.msra.mxu0 0
    %767 = vmatprep.subr.bf16.mxu0 0
    %768 = vmatpush2.bf16.msra.mxu0 0
    %769 = vmatprep.subr.bf16.mxu0 0
    %770 = vmatpush2.bf16.msra.mxu0 0
    %771 = vmatprep.subr.bf16.mxu0 0
    %772 = vmatpush2.bf16.msra.mxu0 0
    %773 = vmatprep.subr.bf16.mxu0 0
    %774 = vmatpush2.bf16.msra.mxu0 0
    %775 = vmatprep.mubr.bf16.mxu0 0
    %776 = vmatmul.mubr.bf16.gmra.mxu0 %v689
    %v777 = vpop.f32.mrf.mxu0
    %v778 = vadd.f32 %v694, %v777
    %v779 = vpop.f32.mrf.mxu0
    %v780 = vpop.f32.mrf.mxu0
    %v781 = vadd.f32 %v694, %v780
    %v782 = vpop.f32.mrf.mxu0
    %783 = vmatprep.mubr.bf16.mxu0 0
    %784 = vmatmul.mubr.bf16.gmra.mxu0 %v690
    %v785 = vpop.f32.mrf.mxu0
    %v786 = vadd.f32 %v694, %v785
    %v787 = vpop.f32.mrf.mxu0
    %v788 = vpop.f32.mrf.mxu0
    %v789 = vadd.f32 %v694, %v788
    %v790 = vpop.f32.mrf.mxu0
    %791 = vdwg.mxu0
    %v792 = vtanh.pop %v778
    %v793 = vtanh.pop %v781
    %v794 = vtanh.pop %v786
    %v795 = vtanh.pop %v789
    %v796 = vpack.c.bf16 %v793, %v792
    %v797 = vpack.c.bf16 %v795, %v794
    %v798 = vunpack.c.l.bf16 %v172
    %v799 = vlaneseq
    %v800 = vshrl.u32 %v799, 7
    %v801 = vsub.s32 2, %v800
    %v802 = vrot.slane %v798, %v801
    %v819 = vunpack.c.l.b16 %v153
    %v820 = vunpack.c.l.b16 %v154
    %v821 = vunpack.c.l.b16 %v155
    %v822 = vunpack.c.l.b16 %v156
    %v823 = vunpack.c.l.b16 %v157
    %v824 = vunpack.c.l.b16 %v158
    %v825 = vunpack.c.l.b16 %v159
    %v826 = vunpack.c.l.b16 %v160
    %v827 = vunpack.c.l.b16 %v161
    %v828 = vunpack.c.l.b16 %v162
    %v829 = vunpack.c.l.b16 %v163
    %v830 = vunpack.c.l.b16 %v164
    %v831 = vunpack.c.l.b16 %v165
    %v832 = vunpack.c.l.b16 %v166
    %v833 = vunpack.c.l.b16 %v167
    %v834 = vunpack.c.l.b16 %v168
    %v835 = vpack.c.b16 %v820, %v819
    %v836 = vpack.c.b16 %v822, %v821
    %v837 = vpack.c.b16 %v824, %v823
    %v838 = vpack.c.b16 %v826, %v825
    %v839 = vpack.c.b16 %v828, %v827
    %v840 = vpack.c.b16 %v830, %v829
    %v841 = vpack.c.b16 %v832, %v831
    %v842 = vpack.c.b16 %v834, %v833
    %851 = vmatprep.subr.bf16.mxu0 0
    %852 = vmatpush1.bf16.msra.mxu0 %v842
    %853 = vmatprep.subr.bf16.mxu0 0
    %854 = vmatpush1.bf16.msra.mxu0 %v841
    %855 = vmatprep.subr.bf16.mxu0 0
    %856 = vmatpush1.bf16.msra.mxu0 %v840
    %857 = vmatprep.subr.bf16.mxu0 0
    %858 = vmatpush1.bf16.msra.mxu0 %v839
    %859 = vmatprep.subr.bf16.mxu0 0
    %860 = vmatpush1.bf16.msra.mxu0 %v838
    %861 = vmatprep.subr.bf16.mxu0 0
    %862 = vmatpush1.bf16.msra.mxu0 %v837
    %863 = vmatprep.subr.bf16.mxu0 0
    %864 = vmatpush1.bf16.msra.mxu0 %v836
    %865 = vmatprep.subr.bf16.mxu0 0
    %866 = vmatpush1.bf16.msra.mxu0 %v835
    %867 = vmatprep.subr.bf16.mxu0 0
    %868 = vmatpush2.bf16.msra.mxu0 0
    %869 = vmatprep.subr.bf16.mxu0 0
    %870 = vmatpush2.bf16.msra.mxu0 0
    %871 = vmatprep.subr.bf16.mxu0 0
    %872 = vmatpush2.bf16.msra.mxu0 0
    %873 = vmatprep.subr.bf16.mxu0 0
    %874 = vmatpush2.bf16.msra.mxu0 0
    %875 = vmatprep.subr.bf16.mxu0 0
    %876 = vmatpush2.bf16.msra.mxu0 0
    %877 = vmatprep.subr.bf16.mxu0 0
    %878 = vmatpush2.bf16.msra.mxu0 0
    %879 = vmatprep.subr.bf16.mxu0 0
    %880 = vmatpush2.bf16.msra.mxu0 0
    %881 = vmatprep.subr.bf16.mxu0 0
    %882 = vmatpush2.bf16.msra.mxu0 0
    %883 = vmatprep.mubr.bf16.mxu0 0
    %884 = vmatmul.mubr.bf16.gmra.mxu0 %v796
    %v885 = vpop.f32.mrf.mxu0
    %v886 = vadd.f32 %v802, %v885
    %v887 = vpop.f32.mrf.mxu0
    %v888 = vpop.f32.mrf.mxu0
    %v889 = vadd.f32 %v802, %v888
    %v890 = vpop.f32.mrf.mxu0
    %891 = vmatprep.mubr.bf16.mxu0 0
    %892 = vmatmul.mubr.bf16.gmra.mxu0 %v797
    %v893 = vpop.f32.mrf.mxu0
    %v894 = vadd.f32 %v802, %v893
    %v895 = vpop.f32.mrf.mxu0
    %v896 = vpop.f32.mrf.mxu0
    %v897 = vadd.f32 %v802, %v896
    %v898 = vpop.f32.mrf.mxu0
    %899 = vdwg.mxu0
    %v900 = vmax.f32 %v886, 0.0
    %v901 = vmax.f32 %v889, 0.0
    %v902 = vmax.f32 %v894, 0.0
    %v903 = vmax.f32 %v897, 0.0
    %v904 = vpack.c.bf16 %v901, %v900
    %v905 = vpack.c.bf16 %v903, %v902
    %v908 = vunpack.c.l.b16 %v169
    %v909 = vunpack.c.l.b16 %v170
    %v910 = vpack.c.b16 %v909, %v908
    %912 = vmatprep.subr.bf16.mxu0 0
    %913 = vmatpush1.bf16.xpose.msra.mxu0 0
    %914 = vmatprep.subr.bf16.mxu0 0
    %915 = vmatpush1.bf16.xpose.msra.mxu0 0
    %916 = vmatprep.subr.bf16.mxu0 0
    %917 = vmatpush1.bf16.xpose.msra.mxu0 0
    %918 = vmatprep.subr.bf16.mxu0 0
    %919 = vmatpush1.bf16.xpose.msra.mxu0 0
    %920 = vmatprep.subr.bf16.mxu0 0
    %921 = vmatpush1.bf16.xpose.msra.mxu0 0
    %922 = vmatprep.subr.bf16.mxu0 0
    %923 = vmatpush1.bf16.xpose.msra.mxu0 0
    %924 = vmatprep.subr.bf16.mxu0 0
    %925 = vmatpush1.bf16.xpose.msra.mxu0 %v905
    %926 = vmatprep.subr.bf16.mxu0 0
    %927 = vmatpush1.bf16.xpose.msra.mxu0 %v904
    %928 = vmatprep.subr.bf16.mxu0 0
    %929 = vmatpush2.bf16.xpose.msra.mxu0 0
    %930 = vmatprep.subr.bf16.mxu0 0
    %931 = vmatpush2.bf16.xpose.msra.mxu0 0
    %932 = vmatprep.subr.bf16.mxu0 0
    %933 = vmatpush2.bf16.xpose.msra.mxu0 0
    %934 = vmatprep.subr.bf16.mxu0 0
    %935 = vmatpush2.bf16.xpose.msra.mxu0 0
    %936 = vmatprep.subr.bf16.mxu0 0
    %937 = vmatpush2.bf16.xpose.msra.mxu0 0
    %938 = vmatprep.subr.bf16.mxu0 0
    %939 = vmatpush2.bf16.xpose.msra.mxu0 0
    %940 = vmatprep.subr.bf16.mxu0 0
    %941 = vmatpush2.bf16.xpose.msra.mxu0 0
    %942 = vmatprep.subr.bf16.mxu0 0
    %943 = vmatpush2.bf16.xpose.msra.mxu0 0
    %944 = vmatprep.mubr.bf16.mxu0 0
    %945 = vmatmul.mubr.bf16.gmra.mxu0 %v910
    %v946 = vpop.f32.mrf.mxu0
    %v947 = vadd.f32 0.0, %v946
    %v948 = vpop.f32.mrf.mxu0
    %v949 = vpop.f32.mrf.mxu0
    %v950 = vpop.f32.mrf.mxu0
    %951 = vdwg.mxu0
    %953 = vset.pattern.permute.xlu0 0
    %954 = vperm.xlu0 %953, %v798
    %v955 = vpop.permute.xlu0 %954
    %v956 = vrot.slane %v955, 3
    %v958 = vadd.f32 %v947, %v956
    %v959 = vsub.f32 0.0, %v958
    %v960 = vmul.f32 %v959, 1.442695
    %v961 = vpow.pop %v960
    %v962 = vadd.f32 %v961, 1.0
    %v963 = vrcp.pop %v962
    %v964 = vmul.f32 1.0, %v963
    %vm965 = vcmask 253952
    %966 = vst.msk [vmem:[#allocation7] sm:$0x1] %vm965, %v964
    // Predicated region
    $region18: #{tpu_custom_call.1} parent=1 // pred_check
      _
    $region19: #{tpu_custom_call.1} parent=1 // pred_check_branch
      %968 = sbr.rel (0) target = $region21
    $region20: #{tpu_custom_call.1} parent=1 // pred_region
      %s970 = ssub.s32 16, 16
      %971 = vsyncadd [#allocation4], %s970
      %s973 = sshll.u32 [#allocation7], 4
      %s974 = int_to_ptr.vmem [resolvable:$true] %s973
      %976 = dma.vmem_to_hbm [thread:$0]  %s974, 16, %s2, [#allocation4]
    $region21: #{tpu_custom_call.1} parent=1 // pred_fallthru
      _
    // Predicated region
    $region22: #{tpu_custom_call.1} parent=1 // pred_check
      _
    $region23: #{tpu_custom_call.1} parent=1 // pred_check_branch
      %978 = sbr.rel (0) target = $region25
    $region24: #{tpu_custom_call.1} parent=1 // pred_region
      %979 = dma.done [#allocation4], 16
    $region25: #{tpu_custom_call.1} parent=1 // pred_fallthru
      _
    %980 = vsyncpa [#allocation3], 1
    %981 = vsyncpa [#allocation6], 1
    %982 = vsyncpa [#allocation4], 1

</llo_original>
